<compile_context>
chip_gen: v7x
topology: tpu7x:2x2x1
jax: 0.10.0
libtpu: 0.0.40
codegen_flags: <defaults>
</compile_context>

<pallas_src>
import functools

import jax
import jax.numpy as jnp
from jax.experimental import pallas as pl
from jax.experimental.pallas import tpu as pltpu


def _round_up(a, m):
    return (a + m - 1) // m * m


def _mlp_kernel(is_res, n_blocks, *refs):
    """Fused MLP forward.

    refs = [x_ref,
            w0, b0, ..., w_{n_blocks-1}, b_{n_blocks-1},   # (Linear, ReLU, Dropout) blocks
            wf_row, bf,                                    # final Linear; weight as (1, H_pad)
            o_ref]                                         # lane-dense (1, tm) output row
    Weights are bf16 (MXU operands); biases are f32; accumulation is f32.
    """
    x_ref = refs[0]
    o_ref = refs[-1]
    params = refs[1:-1]
    ws = params[0::2]
    bs = params[1::2]

    def linear_f32(h_bf16, idx):
        z = jnp.dot(h_bf16, ws[idx][...], preferred_element_type=jnp.float32)
        return z + bs[idx][...]

    def block(h_bf16, idx):
        # Linear -> ReLU -> Dropout (Dropout is identity in eval mode).
        return jnp.maximum(linear_f32(h_bf16, idx), 0.0)

    # TODO(synk): nn.Dropout is identity in eval / inference mode; training-mode
    # stochastic dropout (pltpu.prng_*) is not implemented here.
    h = x_ref[...]                                   # (tm, D_in) bf16
    if is_res:
        h32 = block(h, 0)                            # pre_res: Linear0 -> ReLU -> Dropout
        resid = h32
        h32 = block(h32.astype(jnp.bfloat16), 1)     # res: Linear1 -> ReLU -> Dropout
        h32 = linear_f32(h32.astype(jnp.bfloat16), 2)  # res: Linear2
        h32 = jnp.maximum(h32 + resid, 0.0)          # x += x_resident; after_res ReLU
        for idx in range(3, n_blocks):               # remaining after_res blocks
            h32 = block(h32.astype(jnp.bfloat16), idx)
    else:
        h32 = block(h, 0)
        for idx in range(1, n_blocks):
            h32 = block(h32.astype(jnp.bfloat16), idx)

    # Final Linear(H, 1), lane-dense: contract (1, H_pad) with (tm, H_pad) over the
    # last dim of both -> (1, tm) (same contraction pattern as q @ k.T).
    h_last = h32.astype(jnp.bfloat16)
    y = jax.lax.dot_general(ws[n_blocks][...], h_last,
                            dimension_numbers=(((1,), (1,)), ((), ())),
                            preferred_element_type=jnp.float32)
    y = y + bs[n_blocks][...]                        # (1, 1) bias broadcast
    o_ref[...] = y.astype(o_ref.dtype)


def svtnet_charge_forward(x, weights, biases, *, is_res, tm=None):
    """Pallas wrapper.

    weights[i]: (in_i, out_i) (torch weight transposed); biases[i]: (out_i,) or (1, out_i).
    Returns a (B, 1) array in x.dtype.
    """
    n_layers = len(weights)
    n_blocks = n_layers - 1          # number of (Linear, ReLU, Dropout) blocks
    assert n_blocks >= 1
    if is_res:
        assert n_blocks >= 3, "is_res=True requires len(fc_list) >= 3"
        assert weights[0].shape[1] == weights[2].shape[1], (
            "is_res=True requires fc_list[0] == fc_list[2] for the residual add")

    B, D_in = x.shape
    out_dtype = x.dtype
    LANE, SUBLANE = 128, 16          # bf16 packs 16 rows per sublane group

    # ---- batch tiling: large tiles, ragged batches handled by zero padding.
    if tm is None:
        tm = 512                     # per review; sweep 512-2048 for very large B
    tm = min(tm, _round_up(B, SUBLANE))
    tm = _round_up(tm, SUBLANE)
    if _round_up(B, tm) != tm:       # multi-tile grid: keep output tiles lane-dense
        tm = _round_up(tm, LANE)
    B_pad = _round_up(B, tm)
    num_tiles = B_pad // tm

    # ---- pad hidden widths to 128 lanes (exact), cast matmul operands to bf16 once.
    padded_w, padded_b = [], []
    in_pad = D_in                    # first layer contracts over raw D_in
    for li in range(n_blocks):
        w = jnp.asarray(weights[li], jnp.float32)
        b = jnp.asarray(biases[li], jnp.float32).reshape(1, -1)
        din, dout = w.shape
        dout_pad = _round_up(dout, LANE)
        wp = jnp.zeros((in_pad, dout_pad), jnp.float32).at[:din, :dout].set(w)
        bp = jnp.zeros((1, dout_pad), jnp.float32).at[:, :dout].set(b)
        padded_w.append(wp.astype(jnp.bfloat16))
        padded_b.append(bp)          # biases stay f32
        in_pad = dout_pad
    wf = jnp.asarray(weights[-1], jnp.float32)                 # (H, 1)
    bf = jnp.asarray(biases[-1], jnp.float32).reshape(1, 1)
    wf_row = jnp.zeros((1, in_pad), jnp.float32).at[0, :wf.shape[0]].set(wf[:, 0])
    padded_w.append(wf_row.astype(jnp.bfloat16))
    padded_b.append(bf)

    # ---- input: zero-pad batch, cast activations to bf16 once (halves x DMA bytes).
    x_p = x if B_pad == B else jnp.pad(x, ((0, B_pad - B), (0, 0)))
    x_p = x_p.astype(jnp.bfloat16)

    kernel = functools.partial(_mlp_kernel, is_res, n_blocks)

    in_specs = [pl.BlockSpec((tm, D_in), lambda i: (i, 0))]
    flat_params = []
    # NOTE: weights/biases are grid-invariant; at these sizes double-buffering them is
    # negligible (<0.2 MiB). For much larger fc_list consider single-buffering
    # (pipeline_mode=pl.Buffered) or manual residency to save VMEM on v7x (64 MiB).
    for w, b in zip(padded_w, padded_b):
        in_specs.append(pl.BlockSpec(w.shape, lambda i: (0, 0)))
        in_specs.append(pl.BlockSpec(b.shape, lambda i: (0, 0)))
        flat_params.extend([w, b])

    out_spec = pl.BlockSpec((1, tm), lambda i: (0, i))   # lane-dense output row

    out = pl.pallas_call(
        kernel,
        out_shape=jax.ShapeDtypeStruct((1, B_pad), out_dtype),
        grid_spec=pltpu.PrefetchScalarGridSpec(
            num_scalar_prefetch=0,
            grid=(num_tiles,),
            in_specs=in_specs,
            out_specs=out_spec,
        ),
        compiler_params=pltpu.CompilerParams(
            # Batch tiles are independent -> shard across TensorCores (v7x megacore).
            dimension_semantics=("parallel",)),
    )(x_p, *flat_params)

    return out[0, :B].reshape(B, 1)


def ref_forward_f32(x, weights, biases, *, is_res):
    """Pure-f32 JAX reference mirroring SVTNetCharge.forward (eval mode)."""
    n_blocks = len(weights) - 1

    def lin(h, i):
        return h @ jnp.asarray(weights[i], jnp.float32) + \
            jnp.asarray(biases[i], jnp.float32).reshape(1, -1)

    h = x.astype(jnp.float32)
    if is_res:
        h = jnp.maximum(lin(h, 0), 0.0)
        r = h
        h = jnp.maximum(lin(h, 1), 0.0)
        h = lin(h, 2)
        h = jnp.maximum(h + r, 0.0)
        for i in range(3, n_blocks):
            h = jnp.maximum(lin(h, i), 0.0)
        h = lin(h, n_blocks)
    else:
        for i in range(n_blocks):
            h = jnp.maximum(lin(h, i), 0.0)
        h = lin(h, n_blocks)
    return h


def ref_forward_bf16(x, weights, biases, *, is_res):
    """Reference mirroring the kernel's mixed precision (bf16 MXU operands, f32 accum)."""
    n_blocks = len(weights) - 1

    def lin(h32, i):
        z = jnp.dot(h32.astype(jnp.bfloat16),
                    jnp.asarray(weights[i], jnp.bfloat16),
                    preferred_element_type=jnp.float32)
        return z + jnp.asarray(biases[i], jnp.float32).reshape(1, -1)

    h = x.astype(jnp.float32)
    if is_res:
        h = jnp.maximum(lin(h, 0), 0.0)
        r = h
        h = jnp.maximum(lin(h, 1), 0.0)
        h = lin(h, 2)
        h = jnp.maximum(h + r, 0.0)
        for i in range(3, n_blocks):
            h = jnp.maximum(lin(h, i), 0.0)
        h = lin(h, n_blocks)
    else:
        for i in range(n_blocks):
            h = jnp.maximum(lin(h, i), 0.0)
        h = lin(h, n_blocks)
    return h


if __name__ == "__main__":
    # Module hyperparameters (small, consistent with __init__).
    num_element = 2
    sigma_size = 4
    fc_list = [32, 32, 32]
    dropout_prob = [0.0, 0.0, 0.0]   # eval-mode semantics; values unused
    is_res = True                    # requires fc_list[0] == fc_list[2]

    d_in = num_element * sigma_size * 5  # = 40
    batch = 16

    # Deterministic PyTorch-like init: uniform(-1/sqrt(fan_in), +1/sqrt(fan_in)).
    key = jax.random.PRNGKey(0)
    dims = [d_in] + fc_list + [1]
    weights, biases = [], []
    for li in range(len(dims) - 1):
        fan_in, fan_out = dims[li], dims[li + 1]
        key, kw, kb = jax.random.split(key, 3)
        bound = 1.0 / float(fan_in) ** 0.5
        w = jax.random.uniform(kw, (fan_in, fan_out), jnp.float32, -bound, bound)
        b = jax.random.uniform(kb, (1, fan_out), jnp.float32, -bound, bound)
        weights.append(w)
        biases.append(b)

    key, kx = jax.random.split(key)
    x = jax.random.normal(kx, (batch, d_in), jnp.float32)

    out = svtnet_charge_forward(x, weights, biases, is_res=is_res)
    out = jax.block_until_ready(out)
    assert out.shape == (batch, 1)

    # Primary check: reference with the same mixed precision as the kernel.
    exp_bf16 = ref_forward_bf16(x, weights, biases, is_res=is_res)
    assert jnp.allclose(out, exp_bf16, atol=1e-3, rtol=1e-3), "mismatch vs bf16 reference"

    # Sanity check vs pure-f32 module semantics (loose: bf16 MXU operands).
    exp_f32 = ref_forward_f32(x, weights, biases, is_res=is_res)
    assert jnp.allclose(out, exp_f32, atol=5e-2, rtol=5e-2), "mismatch vs f32 reference"

    print("KERNEL_OK")
</pallas_src>

<mosaic_0001>
module attributes {stable_mosaic.version = 11 : i64} {
  func.func @_mlp_kernel(%arg0: i32, %arg1: memref<16x40xbf16, #tpu.memory_space<vmem>>, %arg2: memref<40x128xbf16, #tpu.memory_space<vmem>>, %arg3: memref<1x128xf32, #tpu.memory_space<vmem>>, %arg4: memref<128x128xbf16, #tpu.memory_space<vmem>>, %arg5: memref<1x128xf32, #tpu.memory_space<vmem>>, %arg6: memref<128x128xbf16, #tpu.memory_space<vmem>>, %arg7: memref<1x128xf32, #tpu.memory_space<vmem>>, %arg8: memref<1x128xbf16, #tpu.memory_space<vmem>>, %arg9: memref<1x1xf32, #tpu.memory_space<vmem>>, %arg10: memref<1x16xf32, #tpu.memory_space<vmem>>) attributes {dimension_semantics = [#tpu.dimension_semantics<parallel>], iteration_bounds = array<i64: 1>, scalar_prefetch = 0 : i64, scratch_operands = 0 : i64, tpu.core_type = #tpu.core_type<tc>, window_params = [{transform_indices = @transform_0, window_bounds = array<i64: 16, 40>}, {pipeline_mode = #tpu.pipeline_mode<synchronous>, transform_indices = @transform_1, window_bounds = array<i64: 40, 128>}, {pipeline_mode = #tpu.pipeline_mode<synchronous>, transform_indices = @transform_2, window_bounds = array<i64: 1, 128>}, {pipeline_mode = #tpu.pipeline_mode<synchronous>, transform_indices = @transform_3, window_bounds = array<i64: 128, 128>}, {pipeline_mode = #tpu.pipeline_mode<synchronous>, transform_indices = @transform_4, window_bounds = array<i64: 1, 128>}, {pipeline_mode = #tpu.pipeline_mode<synchronous>, transform_indices = @transform_5, window_bounds = array<i64: 128, 128>}, {pipeline_mode = #tpu.pipeline_mode<synchronous>, transform_indices = @transform_6, window_bounds = array<i64: 1, 128>}, {pipeline_mode = #tpu.pipeline_mode<synchronous>, transform_indices = @transform_7, window_bounds = array<i64: 1, 128>}, {pipeline_mode = #tpu.pipeline_mode<synchronous>, transform_indices = @transform_8, window_bounds = array<i64: 1, 1>}, {transform_indices = @transform_9, window_bounds = array<i64: 1, 16>}]} {
    %c0 = arith.constant 0 : index
    %c0_0 = arith.constant 0 : index
    %0 = vector.load %arg1[%c0, %c0_0] : memref<16x40xbf16, #tpu.memory_space<vmem>>, vector<16x40xbf16>
    %c0_1 = arith.constant 0 : index
    %c0_2 = arith.constant 0 : index
    %1 = vector.load %arg2[%c0_1, %c0_2] : memref<40x128xbf16, #tpu.memory_space<vmem>>, vector<40x128xbf16>
    %cst = arith.constant dense<0.000000e+00> : vector<16x128xf32>
    %2 = tpu.matmul %0, %1, %cst {dimension_numbers = #tpu.dot_dimension_numbers<[1], [0], [0], [1], [0, 0, 1, 1], [], []>} : vector<16x40xbf16>, vector<40x128xbf16>, vector<16x128xf32> -> vector<16x128xf32>
    %c0_3 = arith.constant 0 : index
    %c0_4 = arith.constant 0 : index
    %3 = vector.load %arg3[%c0_3, %c0_4] : memref<1x128xf32, #tpu.memory_space<vmem>>, vector<1x128xf32>
    %4 = vector.broadcast %3 : vector<1x128xf32> to vector<16x128xf32>
    %5 = arith.addf %2, %4 : vector<16x128xf32>
    %cst_5 = arith.constant 0.000000e+00 : f32
    %6 = vector.broadcast %cst_5 : f32 to vector<16x128xf32>
    %7 = arith.maximumf %5, %6 : vector<16x128xf32>
    %8 = arith.truncf %7 : vector<16x128xf32> to vector<16x128xbf16>
    %c0_6 = arith.constant 0 : index
    %c0_7 = arith.constant 0 : index
    %9 = vector.load %arg4[%c0_6, %c0_7] : memref<128x128xbf16, #tpu.memory_space<vmem>>, vector<128x128xbf16>
    %cst_8 = arith.constant dense<0.000000e+00> : vector<16x128xf32>
    %10 = tpu.matmul %8, %9, %cst_8 {dimension_numbers = #tpu.dot_dimension_numbers<[1], [0], [0], [1], [0, 0, 1, 1], [], []>} : vector<16x128xbf16>, vector<128x128xbf16>, vector<16x128xf32> -> vector<16x128xf32>
    %c0_9 = arith.constant 0 : index
    %c0_10 = arith.constant 0 : index
    %11 = vector.load %arg5[%c0_9, %c0_10] : memref<1x128xf32, #tpu.memory_space<vmem>>, vector<1x128xf32>
    %12 = vector.broadcast %11 : vector<1x128xf32> to vector<16x128xf32>
    %13 = arith.addf %10, %12 : vector<16x128xf32>
    %cst_11 = arith.constant 0.000000e+00 : f32
    %14 = vector.broadcast %cst_11 : f32 to vector<16x128xf32>
    %15 = arith.maximumf %13, %14 : vector<16x128xf32>
    %16 = arith.truncf %15 : vector<16x128xf32> to vector<16x128xbf16>
    %c0_12 = arith.constant 0 : index
    %c0_13 = arith.constant 0 : index
    %17 = vector.load %arg6[%c0_12, %c0_13] : memref<128x128xbf16, #tpu.memory_space<vmem>>, vector<128x128xbf16>
    %cst_14 = arith.constant dense<0.000000e+00> : vector<16x128xf32>
    %18 = tpu.matmul %16, %17, %cst_14 {dimension_numbers = #tpu.dot_dimension_numbers<[1], [0], [0], [1], [0, 0, 1, 1], [], []>} : vector<16x128xbf16>, vector<128x128xbf16>, vector<16x128xf32> -> vector<16x128xf32>
    %c0_15 = arith.constant 0 : index
    %c0_16 = arith.constant 0 : index
    %19 = vector.load %arg7[%c0_15, %c0_16] : memref<1x128xf32, #tpu.memory_space<vmem>>, vector<1x128xf32>
    %20 = vector.broadcast %19 : vector<1x128xf32> to vector<16x128xf32>
    %21 = arith.addf %18, %20 : vector<16x128xf32>
    %22 = arith.addf %21, %7 : vector<16x128xf32>
    %cst_17 = arith.constant 0.000000e+00 : f32
    %23 = vector.broadcast %cst_17 : f32 to vector<16x128xf32>
    %24 = arith.maximumf %22, %23 : vector<16x128xf32>
    %25 = arith.truncf %24 : vector<16x128xf32> to vector<16x128xbf16>
    %c0_18 = arith.constant 0 : index
    %c0_19 = arith.constant 0 : index
    %26 = vector.load %arg8[%c0_18, %c0_19] : memref<1x128xbf16, #tpu.memory_space<vmem>>, vector<1x128xbf16>
    %cst_20 = arith.constant dense<0.000000e+00> : vector<1x16xf32>
    %27 = tpu.matmul %26, %25, %cst_20 {dimension_numbers = #tpu.dot_dimension_numbers<[1], [1], [0], [0], [0, 0, 1, 0], [], []>} : vector<1x128xbf16>, vector<16x128xbf16>, vector<1x16xf32> -> vector<1x16xf32>
    %c0_21 = arith.constant 0 : index
    %c0_22 = arith.constant 0 : index
    %28 = vector.load %arg9[%c0_21, %c0_22] : memref<1x1xf32, #tpu.memory_space<vmem>>, vector<1x1xf32>
    %29 = vector.broadcast %28 : vector<1x1xf32> to vector<1x16xf32>
    %30 = arith.addf %27, %29 : vector<1x16xf32>
    %c0_23 = arith.constant 0 : index
    %c0_24 = arith.constant 0 : index
    %31 = vector.load %arg10[%c0_23, %c0_24] : memref<1x16xf32, #tpu.memory_space<vmem>>, vector<1x16xf32>
    tpu.vector_store %arg10[%c0_23, %c0_24], %30 {strides = array<i32>} : memref<1x16xf32, #tpu.memory_space<vmem>>, vector<1x16xf32>,
    return
  }
  func.func @transform_0(%arg0: i32) -> (i32, i32) {
    %c0_i32 = arith.constant 0 : i32
    %c0_i32_0 = arith.constant 0 : i32
    return %arg0, %c0_i32 : i32, i32
  }
  func.func @transform_1(%arg0: i32) -> (i32, i32) {
    %c0_i32 = arith.constant 0 : i32
    %c0_i32_0 = arith.constant 0 : i32
    %c0_i32_1 = arith.constant 0 : i32
    return %c0_i32, %c0_i32_0 : i32, i32
  }
  func.func @transform_2(%arg0: i32) -> (i32, i32) {
    %c0_i32 = arith.constant 0 : i32
    %c0_i32_0 = arith.constant 0 : i32
    %c0_i32_1 = arith.constant 0 : i32
    return %c0_i32, %c0_i32_0 : i32, i32
  }
  func.func @transform_3(%arg0: i32) -> (i32, i32) {
    %c0_i32 = arith.constant 0 : i32
    %c0_i32_0 = arith.constant 0 : i32
    %c0_i32_1 = arith.constant 0 : i32
    return %c0_i32, %c0_i32_0 : i32, i32
  }
  func.func @transform_4(%arg0: i32) -> (i32, i32) {
    %c0_i32 = arith.constant 0 : i32
    %c0_i32_0 = arith.constant 0 : i32
    %c0_i32_1 = arith.constant 0 : i32
    return %c0_i32, %c0_i32_0 : i32, i32
  }
  func.func @transform_5(%arg0: i32) -> (i32, i32) {
    %c0_i32 = arith.constant 0 : i32
    %c0_i32_0 = arith.constant 0 : i32
    %c0_i32_1 = arith.constant 0 : i32
    return %c0_i32, %c0_i32_0 : i32, i32
  }
  func.func @transform_6(%arg0: i32) -> (i32, i32) {
    %c0_i32 = arith.constant 0 : i32
    %c0_i32_0 = arith.constant 0 : i32
    %c0_i32_1 = arith.constant 0 : i32
    return %c0_i32, %c0_i32_0 : i32, i32
  }
  func.func @transform_7(%arg0: i32) -> (i32, i32) {
    %c0_i32 = arith.constant 0 : i32
    %c0_i32_0 = arith.constant 0 : i32
    %c0_i32_1 = arith.constant 0 : i32
    return %c0_i32, %c0_i32_0 : i32, i32
  }
  func.func @transform_8(%arg0: i32) -> (i32, i32) {
    %c0_i32 = arith.constant 0 : i32
    %c0_i32_0 = arith.constant 0 : i32
    %c0_i32_1 = arith.constant 0 : i32
    return %c0_i32, %c0_i32_0 : i32, i32
  }
  func.func @transform_9(%arg0: i32) -> (i32, i32) {
    %c0_i32 = arith.constant 0 : i32
    %c0_i32_0 = arith.constant 0 : i32
    return %c0_i32, %arg0 : i32, i32
  }
}

</mosaic_0001>

<llo_original>
// kernel: tpu_custom_call.1
$region0: #{tpu_custom_call.1}
  #allocation0 [shape = 'u32[]', space=smem, size = 0x4, offset = 0x4, fixed_abs, tag = 'smem constant byte address 0x4 - core index']
  #allocation1 [shape = 'u32[144,128]{1,0:T(1,128)}', space=vmem, size = 0x12000, scoped, tag = 'internal scratch']
  #allocation2 [shape = 'f32[1,1]{1,0:T(1,128)S(1)}', space=vmem, size = 0x200, scoped, tag = 'scoped memory for tpu_custom_call.1']
  %s0 = inlined_call_operand.hbm [shape: bf16[16,40], index: 0, kind: input, shape index: {}]
  %s1 = inlined_call_operand.hbm [shape: bf16[40,128], index: 1, kind: input, shape index: {}]
  %s2 = inlined_call_operand.vmem [shape: f32[1,128], index: 2, kind: input, shape index: {}]
  %s3 = inlined_call_operand.hbm [shape: bf16[128,128], index: 3, kind: input, shape index: {}]
  %s4 = inlined_call_operand.vmem [shape: f32[1,128], index: 4, kind: input, shape index: {}]
  %s5 = inlined_call_operand.hbm [shape: bf16[128,128], index: 5, kind: input, shape index: {}]
  %s6 = inlined_call_operand.vmem [shape: f32[1,128], index: 6, kind: input, shape index: {}]
  %s7 = inlined_call_operand.vmem [shape: bf16[1,128], index: 7, kind: input, shape index: {}]
  %s8 = inlined_call_operand.<no memory space> [shape: f32[1,1], index: 8, kind: input, shape index: {}]
  %s9 = inlined_call_operand.hbm [shape: f32[1,16], index: 9, kind: output, shape index: {}]
  %s10 = sld [smem:[#allocation0]]
  $region62: #{tpu_custom_call.1} parent=0
    _
  %s12 = ssub.s32 1, %s10
  %s13 = scalar_select 0, %s12, %s10
  %v14 = vstv %s8
  %15 = vst [vmem:[#allocation2] sm:$0x1] %v14
  $region1: #{tpu_custom_call.1} parent=0
    #allocation3 [shape = 'u8[4096]{0}', space=vmem, size = 0x1000, scoped, tag = 'input window, operand 0, single buffered']
    #allocation4 [shape = 's32[1]{0}', space=sflag, size = 0x4, scoped, tag = 'scoped memory for tpu_custom_call.1']
    #allocation5 [shape = 's32[1]{0}', space=sflag, size = 0x4, scoped, tag = 'scoped memory for tpu_custom_call.1']
    #allocation6 [shape = 'u8[10240]{0}', space=vmem, size = 0x2800, scoped, tag = 'input window, operand 1, single buffered']
    #allocation7 [shape = 's32[1]{0}', space=sflag, size = 0x4, scoped, tag = 'scoped memory for tpu_custom_call.1']
    #allocation8 [shape = 'u8[32768]{0}', space=vmem, size = 0x8000, scoped, tag = 'input window, operand 3, single buffered']
    #allocation9 [shape = 'u8[32768]{0}', space=vmem, size = 0x8000, scoped, tag = 'input window, operand 5, single buffered']
    #allocation10 [shape = 's32[1]{0}', space=sflag, size = 0x4, scoped, tag = 'scoped memory for tpu_custom_call.1']
    #allocation11 [shape = 'u8[512]{0}', space=vmem, size = 0x400, scoped, tag = 'output window, operand 0, single buffered']
    %16 = vsyncpa [#allocation4], 0
    %17 = vsyncpa [#allocation7], 0
    %18 = vsyncpa [#allocation10], 0
    %19 = vsyncpa [#allocation5], 0
    // Predicated region
    $region2: #{tpu_custom_call.1} parent=1 // pred_check
      _
    $region3: #{tpu_custom_call.1} parent=1 // pred_check_branch
      %21 = sbr.rel (0) target = $region5
    $region4: #{tpu_custom_call.1} parent=1 // pred_region
      %s23 = ssub.s32 128, 128
      %24 = vsyncadd [#allocation4], %s23
      %s25 = sshll.u32 [#allocation3], 4
      %s26 = int_to_ptr.vmem [resolvable:$true] %s25
      %31 = dma.hbm_to_vmem [thread:$0]  %s0, 128, %s26, [#allocation4], 64, 64, 4
    $region5: #{tpu_custom_call.1} parent=1 // pred_fallthru
      _
    // Predicated region
    $region6: #{tpu_custom_call.1} parent=1 // pred_check
      _
    $region7: #{tpu_custom_call.1} parent=1 // pred_check_branch
      %33 = sbr.rel (0) target = $region9
    $region8: #{tpu_custom_call.1} parent=1 // pred_region
      %s35 = ssub.s32 320, 320
      %36 = vsyncadd [#allocation7], %s35
      %s37 = sshll.u32 [#allocation6], 4
      %s38 = int_to_ptr.vmem [resolvable:$true] %s37
      %43 = dma.hbm_to_vmem [thread:$0]  %s1, 320, %s38, [#allocation7], 64, 64, 4
    $region9: #{tpu_custom_call.1} parent=1 // pred_fallthru
      _
    // Predicated region
    $region10: #{tpu_custom_call.1} parent=1 // pred_check
      _
    $region11: #{tpu_custom_call.1} parent=1 // pred_check_branch
      %45 = sbr.rel (0) target = $region13
    $region12: #{tpu_custom_call.1} parent=1 // pred_region
      _
    $region13: #{tpu_custom_call.1} parent=1 // pred_fallthru
      _
    // Predicated region
    $region14: #{tpu_custom_call.1} parent=1 // pred_check
      _
    $region15: #{tpu_custom_call.1} parent=1 // pred_check_branch
      %47 = sbr.rel (0) target = $region17
    $region16: #{tpu_custom_call.1} parent=1 // pred_region
      %s49 = ssub.s32 1024, 1024
      %50 = vsyncadd [#allocation7], %s49
      %s51 = sshll.u32 [#allocation8], 4
      %s52 = int_to_ptr.vmem [resolvable:$true] %s51
      %57 = dma.hbm_to_vmem [thread:$0]  %s3, 1024, %s52, [#allocation7], 64, 64, 4
    $region17: #{tpu_custom_call.1} parent=1 // pred_fallthru
      _
    // Predicated region
    $region18: #{tpu_custom_call.1} parent=1 // pred_check
      _
    $region19: #{tpu_custom_call.1} parent=1 // pred_check_branch
      %59 = sbr.rel (0) target = $region21
    $region20: #{tpu_custom_call.1} parent=1 // pred_region
      _
    $region21: #{tpu_custom_call.1} parent=1 // pred_fallthru
      _
    // Predicated region
    $region22: #{tpu_custom_call.1} parent=1 // pred_check
      _
    $region23: #{tpu_custom_call.1} parent=1 // pred_check_branch
      %61 = sbr.rel (0) target = $region25
    $region24: #{tpu_custom_call.1} parent=1 // pred_region
      %s63 = ssub.s32 1024, 1024
      %64 = vsyncadd [#allocation10], %s63
      %s65 = sshll.u32 [#allocation9], 4
      %s66 = int_to_ptr.vmem [resolvable:$true] %s65
      %71 = dma.hbm_to_vmem [thread:$0]  %s5, 1024, %s66, [#allocation10], 64, 64, 4
    $region25: #{tpu_custom_call.1} parent=1 // pred_fallthru
      _
    // Predicated region
    $region26: #{tpu_custom_call.1} parent=1 // pred_check
      _
    $region27: #{tpu_custom_call.1} parent=1 // pred_check_branch
      %73 = sbr.rel (0) target = $region29
    $region28: #{tpu_custom_call.1} parent=1 // pred_region
      _
    $region29: #{tpu_custom_call.1} parent=1 // pred_fallthru
      _
    // Predicated region
    $region30: #{tpu_custom_call.1} parent=1 // pred_check
      _
    $region31: #{tpu_custom_call.1} parent=1 // pred_check_branch
      %75 = sbr.rel (0) target = $region33
    $region32: #{tpu_custom_call.1} parent=1 // pred_region
      _
    $region33: #{tpu_custom_call.1} parent=1 // pred_fallthru
      _
    // Predicated region
    $region34: #{tpu_custom_call.1} parent=1 // pred_check
      _
    $region35: #{tpu_custom_call.1} parent=1 // pred_check_branch
      %77 = sbr.rel (0) target = $region37
    $region36: #{tpu_custom_call.1} parent=1 // pred_region
      _
    $region37: #{tpu_custom_call.1} parent=1 // pred_fallthru
      _
    // Predicated region
    $region38: #{tpu_custom_call.1} parent=1 // pred_check
      _
    $region39: #{tpu_custom_call.1} parent=1 // pred_check_branch
      %79 = sbr.rel (0) target = $region41
    $region40: #{tpu_custom_call.1} parent=1 // pred_region
      %80 = dma.done [#allocation4], 128
    $region41: #{tpu_custom_call.1} parent=1 // pred_fallthru
      _
    // Predicated region
    $region42: #{tpu_custom_call.1} parent=1 // pred_check
      _
    $region43: #{tpu_custom_call.1} parent=1 // pred_check_branch
      %82 = sbr.rel (0) target = $region45
    $region44: #{tpu_custom_call.1} parent=1 // pred_region
      %83 = dma.done [#allocation7], 320
    $region45: #{tpu_custom_call.1} parent=1 // pred_fallthru
      _
    // Predicated region
    $region46: #{tpu_custom_call.1} parent=1 // pred_check
      _
    $region47: #{tpu_custom_call.1} parent=1 // pred_check_branch
      %85 = sbr.rel (0) target = $region49
    $region48: #{tpu_custom_call.1} parent=1 // pred_region
      %86 = dma.done [#allocation7], 1024
    $region49: #{tpu_custom_call.1} parent=1 // pred_fallthru
      _
    // Predicated region
    $region50: #{tpu_custom_call.1} parent=1 // pred_check
      _
    $region51: #{tpu_custom_call.1} parent=1 // pred_check_branch
      %88 = sbr.rel (0) target = $region53
    $region52: #{tpu_custom_call.1} parent=1 // pred_region
      %89 = dma.done [#allocation10], 1024
    $region53: #{tpu_custom_call.1} parent=1 // pred_fallthru
      _
    %v91 = vld [vmem:[#allocation3] sm:$0xf]
    %v92 = vld [vmem:[#allocation3 + $0x4] sm:$0xf]
    %v93 = vld [vmem:[#allocation6] sm:$0xf]
    %v94 = vld [vmem:[#allocation6 + $0x4] sm:$0xf]
    %v95 = vld [vmem:[#allocation6 + $0x8] sm:$0xf]
    %v96 = vld [vmem:[#allocation6 + $0xc] sm:$0xf]
    %v97 = vld [vmem:[#allocation6 + $0x10] sm:$0xf]
    %v98 = vld [vmem:[%s2] sm:$0x1]
    %v100 = vlaneseq
    %v101 = vshrl.u32 %v100, 7
    %v102 = vsub.s32 0, %v101
    %v103 = vrot.slane %v98, %v102
    %v107 = vunpack.c.l.b16 %v91
    %v108 = vunpack.c.l.b16 %v92
    %v109 = vpack.c.b16 %v108, %v107
    %v115 = vunpack.c.l.b16 %v93
    %v116 = vunpack.c.l.b16 %v94
    %v117 = vunpack.c.l.b16 %v95
    %v118 = vunpack.c.l.b16 %v96
    %v119 = vunpack.c.l.b16 %v97
    %v120 = vpack.c.b16 %v116, %v115
    %v121 = vpack.c.b16 %v118, %v117
    %v122 = vpack.c.b16 %v119, %v119
    %vm125 = vcmask 326656
    %v127 = vsel %vm125, %v109, 0
    %vm129 = vcmask 1043456
    %v131 = vsel %vm129, %v122, 0
    %133 = vmatprep.subr.bf16.mxu0 0
    %134 = vmatpush1.bf16.msra.mxu0 %v120
    %135 = vmatprep.subr.bf16.mxu0 0
    %136 = vmatpush1.bf16.msra.mxu0 %v121
    %137 = vmatprep.subr.bf16.mxu0 0
    %138 = vmatpush1.bf16.msra.mxu0 %v131
    %139 = vmatprep.subr.bf16.mxu0 0
    %140 = vmatpush1.bf16.msra.mxu0 0
    %141 = vmatprep.subr.bf16.mxu0 0
    %142 = vmatpush1.bf16.msra.mxu0 0
    %143 = vmatprep.subr.bf16.mxu0 0
    %144 = vmatpush1.bf16.msra.mxu0 0
    %145 = vmatprep.subr.bf16.mxu0 0
    %146 = vmatpush1.bf16.msra.mxu0 0
    %147 = vmatprep.subr.bf16.mxu0 0
    %148 = vmatpush1.bf16.msra.mxu0 0
    %149 = vmatprep.subr.bf16.mxu0 0
    %150 = vmatpush1.bf16.msra.mxu0 0
    %151 = vmatprep.subr.bf16.mxu0 0
    %152 = vmatpush1.bf16.msra.mxu0 0
    %153 = vmatprep.subr.bf16.mxu0 0
    %154 = vmatpush1.bf16.msra.mxu0 0
    %155 = vmatprep.subr.bf16.mxu0 0
    %156 = vmatpush1.bf16.msra.mxu0 0
    %157 = vmatprep.subr.bf16.mxu0 0
    %158 = vmatpush1.bf16.msra.mxu0 0
    %159 = vmatprep.subr.bf16.mxu0 0
    %160 = vmatpush1.bf16.msra.mxu0 0
    %161 = vmatprep.subr.bf16.mxu0 0
    %162 = vmatpush1.bf16.msra.mxu0 0
    %163 = vmatprep.subr.bf16.mxu0 0
    %164 = vmatpush1.bf16.msra.mxu0 0
    %165 = vmatprep.mubr.bf16.mxu0 0
    %166 = vmatmul.mubr.bf16.gmra.mrb[0].mxu0 %v127
    %v167 = vpop.f32.mrb[0].mxu0
    %v168 = vadd.f32 %v103, %v167
    %v169 = vpop.f32.mrb[0].mxu0
    %v170 = vpop.f32.mrb[0].mxu0
    %v171 = vadd.f32 %v103, %v170
    %v172 = vpop.f32.mrb[0].mxu0
    %173 = vdwg.mxu0
    %v174 = vmax.f32 %v168, 0.0
    %v175 = vmax.f32 %v171, 0.0
    %v176 = vpack.c.bf16 %v175, %v174
    %v177 = vld [vmem:[#allocation8] sm:$0xf]
    %v178 = vld [vmem:[#allocation8 + $0x4] sm:$0xf]
    %v179 = vld [vmem:[#allocation8 + $0x8] sm:$0xf]
    %v180 = vld [vmem:[#allocation8 + $0xc] sm:$0xf]
    %v181 = vld [vmem:[#allocation8 + $0x10] sm:$0xf]
    %v182 = vld [vmem:[#allocation8 + $0x14] sm:$0xf]
    %v183 = vld [vmem:[#allocation8 + $0x18] sm:$0xf]
    %v184 = vld [vmem:[#allocation8 + $0x1c] sm:$0xf]
    %v185 = vld [vmem:[#allocation8 + $0x20] sm:$0xf]
    %v186 = vld [vmem:[#allocation8 + $0x24] sm:$0xf]
    %v187 = vld [vmem:[#allocation8 + $0x28] sm:$0xf]
    %v188 = vld [vmem:[#allocation8 + $0x2c] sm:$0xf]
    %v189 = vld [vmem:[#allocation8 + $0x30] sm:$0xf]
    %v190 = vld [vmem:[#allocation8 + $0x34] sm:$0xf]
    %v191 = vld [vmem:[#allocation8 + $0x38] sm:$0xf]
    %v192 = vld [vmem:[#allocation8 + $0x3c] sm:$0xf]
    %v193 = vld [vmem:[%s4] sm:$0x1]
    %v195 = vlaneseq
    %v196 = vshrl.u32 %v195, 7
    %v197 = vsub.s32 0, %v196
    %v198 = vrot.slane %v193, %v197
    %v216 = vunpack.c.l.b16 %v177
    %v217 = vunpack.c.l.b16 %v178
    %v218 = vunpack.c.l.b16 %v179
    %v219 = vunpack.c.l.b16 %v180
    %v220 = vunpack.c.l.b16 %v181
    %v221 = vunpack.c.l.b16 %v182
    %v222 = vunpack.c.l.b16 %v183
    %v223 = vunpack.c.l.b16 %v184
    %v224 = vunpack.c.l.b16 %v185
    %v225 = vunpack.c.l.b16 %v186
    %v226 = vunpack.c.l.b16 %v187
    %v227 = vunpack.c.l.b16 %v188
    %v228 = vunpack.c.l.b16 %v189
    %v229 = vunpack.c.l.b16 %v190
    %v230 = vunpack.c.l.b16 %v191
    %v231 = vunpack.c.l.b16 %v192
    %v232 = vpack.c.b16 %v217, %v216
    %v233 = vpack.c.b16 %v219, %v218
    %v234 = vpack.c.b16 %v221, %v220
    %v235 = vpack.c.b16 %v223, %v222
    %v236 = vpack.c.b16 %v225, %v224
    %v237 = vpack.c.b16 %v227, %v226
    %v238 = vpack.c.b16 %v229, %v228
    %v239 = vpack.c.b16 %v231, %v230
    %248 = vmatprep.subr.bf16.mxu0 0
    %249 = vmatpush1.bf16.msra.mxu0 %v232
    %250 = vmatprep.subr.bf16.mxu0 0
    %251 = vmatpush1.bf16.msra.mxu0 %v233
    %252 = vmatprep.subr.bf16.mxu0 0
    %253 = vmatpush1.bf16.msra.mxu0 %v234
    %254 = vmatprep.subr.bf16.mxu0 0
    %255 = vmatpush1.bf16.msra.mxu0 %v235
    %256 = vmatprep.subr.bf16.mxu0 0
    %257 = vmatpush1.bf16.msra.mxu0 %v236
    %258 = vmatprep.subr.bf16.mxu0 0
    %259 = vmatpush1.bf16.msra.mxu0 %v237
    %260 = vmatprep.subr.bf16.mxu0 0
    %261 = vmatpush1.bf16.msra.mxu0 %v238
    %262 = vmatprep.subr.bf16.mxu0 0
    %263 = vmatpush1.bf16.msra.mxu0 %v239
    %264 = vmatprep.subr.bf16.mxu0 0
    %265 = vmatpush1.bf16.msra.mxu0 0
    %266 = vmatprep.subr.bf16.mxu0 0
    %267 = vmatpush1.bf16.msra.mxu0 0
    %268 = vmatprep.subr.bf16.mxu0 0
    %269 = vmatpush1.bf16.msra.mxu0 0
    %270 = vmatprep.subr.bf16.mxu0 0
    %271 = vmatpush1.bf16.msra.mxu0 0
    %272 = vmatprep.subr.bf16.mxu0 0
    %273 = vmatpush1.bf16.msra.mxu0 0
    %274 = vmatprep.subr.bf16.mxu0 0
    %275 = vmatpush1.bf16.msra.mxu0 0
    %276 = vmatprep.subr.bf16.mxu0 0
    %277 = vmatpush1.bf16.msra.mxu0 0
    %278 = vmatprep.subr.bf16.mxu0 0
    %279 = vmatpush1.bf16.msra.mxu0 0
    %280 = vmatprep.mubr.bf16.mxu0 0
    %281 = vmatmul.mubr.bf16.gmra.mrb[0].mxu0 %v176
    %v282 = vpop.f32.mrb[0].mxu0
    %v283 = vadd.f32 %v198, %v282
    %v284 = vpop.f32.mrb[0].mxu0
    %v285 = vpop.f32.mrb[0].mxu0
    %v286 = vadd.f32 %v198, %v285
    %v287 = vpop.f32.mrb[0].mxu0
    %288 = vdwg.mxu0
    %v289 = vmax.f32 %v283, 0.0
    %v290 = vmax.f32 %v286, 0.0
    %v291 = vpack.c.bf16 %v290, %v289
    %v292 = vld [vmem:[#allocation9] sm:$0xf]
    %v293 = vld [vmem:[#allocation9 + $0x4] sm:$0xf]
    %v294 = vld [vmem:[#allocation9 + $0x8] sm:$0xf]
    %v295 = vld [vmem:[#allocation9 + $0xc] sm:$0xf]
    %v296 = vld [vmem:[#allocation9 + $0x10] sm:$0xf]
    %v297 = vld [vmem:[#allocation9 + $0x14] sm:$0xf]
    %v298 = vld [vmem:[#allocation9 + $0x18] sm:$0xf]
    %v299 = vld [vmem:[#allocation9 + $0x1c] sm:$0xf]
    %v300 = vld [vmem:[#allocation9 + $0x20] sm:$0xf]
    %v301 = vld [vmem:[#allocation9 + $0x24] sm:$0xf]
    %v302 = vld [vmem:[#allocation9 + $0x28] sm:$0xf]
    %v303 = vld [vmem:[#allocation9 + $0x2c] sm:$0xf]
    %v304 = vld [vmem:[#allocation9 + $0x30] sm:$0xf]
    %v305 = vld [vmem:[#allocation9 + $0x34] sm:$0xf]
    %v306 = vld [vmem:[#allocation9 + $0x38] sm:$0xf]
    %v307 = vld [vmem:[#allocation9 + $0x3c] sm:$0xf]
    %v308 = vld [vmem:[%s6] sm:$0x1]
    %v310 = vlaneseq
    %v311 = vshrl.u32 %v310, 7
    %v312 = vsub.s32 0, %v311
    %v313 = vrot.slane %v308, %v312
    %v331 = vunpack.c.l.b16 %v292
    %v332 = vunpack.c.l.b16 %v293
    %v333 = vunpack.c.l.b16 %v294
    %v334 = vunpack.c.l.b16 %v295
    %v335 = vunpack.c.l.b16 %v296
    %v336 = vunpack.c.l.b16 %v297
    %v337 = vunpack.c.l.b16 %v298
    %v338 = vunpack.c.l.b16 %v299
    %v339 = vunpack.c.l.b16 %v300
    %v340 = vunpack.c.l.b16 %v301
    %v341 = vunpack.c.l.b16 %v302
    %v342 = vunpack.c.l.b16 %v303
    %v343 = vunpack.c.l.b16 %v304
    %v344 = vunpack.c.l.b16 %v305
    %v345 = vunpack.c.l.b16 %v306
    %v346 = vunpack.c.l.b16 %v307
    %v347 = vpack.c.b16 %v332, %v331
    %v348 = vpack.c.b16 %v334, %v333
    %v349 = vpack.c.b16 %v336, %v335
    %v350 = vpack.c.b16 %v338, %v337
    %v351 = vpack.c.b16 %v340, %v339
    %v352 = vpack.c.b16 %v342, %v341
    %v353 = vpack.c.b16 %v344, %v343
    %v354 = vpack.c.b16 %v346, %v345
    %363 = vmatprep.subr.bf16.mxu0 0
    %364 = vmatpush1.bf16.msra.mxu0 %v347
    %365 = vmatprep.subr.bf16.mxu0 0
    %366 = vmatpush1.bf16.msra.mxu0 %v348
    %367 = vmatprep.subr.bf16.mxu0 0
    %368 = vmatpush1.bf16.msra.mxu0 %v349
    %369 = vmatprep.subr.bf16.mxu0 0
    %370 = vmatpush1.bf16.msra.mxu0 %v350
    %371 = vmatprep.subr.bf16.mxu0 0
    %372 = vmatpush1.bf16.msra.mxu0 %v351
    %373 = vmatprep.subr.bf16.mxu0 0
    %374 = vmatpush1.bf16.msra.mxu0 %v352
    %375 = vmatprep.subr.bf16.mxu0 0
    %376 = vmatpush1.bf16.msra.mxu0 %v353
    %377 = vmatprep.subr.bf16.mxu0 0
    %378 = vmatpush1.bf16.msra.mxu0 %v354
    %379 = vmatprep.subr.bf16.mxu0 0
    %380 = vmatpush1.bf16.msra.mxu0 0
    %381 = vmatprep.subr.bf16.mxu0 0
    %382 = vmatpush1.bf16.msra.mxu0 0
    %383 = vmatprep.subr.bf16.mxu0 0
    %384 = vmatpush1.bf16.msra.mxu0 0
    %385 = vmatprep.subr.bf16.mxu0 0
    %386 = vmatpush1.bf16.msra.mxu0 0
    %387 = vmatprep.subr.bf16.mxu0 0
    %388 = vmatpush1.bf16.msra.mxu0 0
    %389 = vmatprep.subr.bf16.mxu0 0
    %390 = vmatpush1.bf16.msra.mxu0 0
    %391 = vmatprep.subr.bf16.mxu0 0
    %392 = vmatpush1.bf16.msra.mxu0 0
    %393 = vmatprep.subr.bf16.mxu0 0
    %394 = vmatpush1.bf16.msra.mxu0 0
    %395 = vmatprep.mubr.bf16.mxu0 0
    %396 = vmatmul.mubr.bf16.gmra.mrb[0].mxu0 %v291
    %v397 = vpop.f32.mrb[0].mxu0
    %v398 = vadd.f32 %v313, %v397
    %v399 = vpop.f32.mrb[0].mxu0
    %v400 = vpop.f32.mrb[0].mxu0
    %v401 = vadd.f32 %v313, %v400
    %v402 = vpop.f32.mrb[0].mxu0
    %403 = vdwg.mxu0
    %v404 = vadd.f32 %v398, %v174
    %v405 = vadd.f32 %v401, %v175
    %v406 = vmax.f32 %v404, 0.0
    %v407 = vmax.f32 %v405, 0.0
    %v408 = vpack.c.bf16 %v407, %v406
    %v409 = vld [vmem:[%s7] sm:$0x1]
    %v410 = vld [vmem:[#allocation2] sm:$0x1]
    %412 = vset.pattern.permute.xlu0 0
    %413 = vperm.xlu0 %412, %v410
    %v414 = vpop.permute.xlu0 %413
    %v416 = vlaneseq
    %v417 = vshrl.u32 %v416, 7
    %v418 = vsub.s32 0, %v417
    %v419 = vrot.slane %v414, %v418
    %420 = vmatprep.subr.bf16.mxu0 0
    %421 = vmatpush1.bf16.xpose.msra.mxu0 %v408
    %422 = vmatprep.subr.bf16.mxu0 0
    %423 = vmatpush1.bf16.xpose.msra.mxu0 0
    %424 = vmatprep.subr.bf16.mxu0 0
    %425 = vmatpush1.bf16.xpose.msra.mxu0 0
    %426 = vmatprep.subr.bf16.mxu0 0
    %427 = vmatpush1.bf16.xpose.msra.mxu0 0
    %428 = vmatprep.subr.bf16.mxu0 0
    %429 = vmatpush1.bf16.xpose.msra.mxu0 0
    %430 = vmatprep.subr.bf16.mxu0 0
    %431 = vmatpush1.bf16.xpose.msra.mxu0 0
    %432 = vmatprep.subr.bf16.mxu0 0
    %433 = vmatpush1.bf16.xpose.msra.mxu0 0
    %434 = vmatprep.subr.bf16.mxu0 0
    %435 = vmatpush1.bf16.xpose.msra.mxu0 0
    %436 = vmatprep.subr.bf16.mxu0 0
    %437 = vmatpush1.bf16.xpose.msra.mxu0 0
    %438 = vmatprep.subr.bf16.mxu0 0
    %439 = vmatpush1.bf16.xpose.msra.mxu0 0
    %440 = vmatprep.subr.bf16.mxu0 0
    %441 = vmatpush1.bf16.xpose.msra.mxu0 0
    %442 = vmatprep.subr.bf16.mxu0 0
    %443 = vmatpush1.bf16.xpose.msra.mxu0 0
    %444 = vmatprep.subr.bf16.mxu0 0
    %445 = vmatpush1.bf16.xpose.msra.mxu0 0
    %446 = vmatprep.subr.bf16.mxu0 0
    %447 = vmatpush1.bf16.xpose.msra.mxu0 0
    %448 = vmatprep.subr.bf16.mxu0 0
    %449 = vmatpush1.bf16.xpose.msra.mxu0 0
    %450 = vmatprep.subr.bf16.mxu0 0
    %451 = vmatpush1.bf16.xpose.msra.mxu0 0
    %452 = vmatprep.mubr.bf16.mxu0 0
    %453 = vmatmul.mubr.bf16.gmra.mrb[0].mxu0 %v409
    %v454 = vpop.f32.mrb[0].mxu0
    %v455 = vadd.f32 %v419, %v454
    %v456 = vpop.f32.mrb[0].mxu0
    %v457 = vpop.f32.mrb[0].mxu0
    %v458 = vpop.f32.mrb[0].mxu0
    %459 = vdwg.mxu0
    %vm460 = vcmask 122880
    %461 = vst.msk [vmem:[#allocation11] sm:$0x1] %vm460, %v455
    // Predicated region
    $region54: #{tpu_custom_call.1} parent=1 // pred_check
      _
    $region55: #{tpu_custom_call.1} parent=1 // pred_check_branch
      %463 = sbr.rel (0) target = $region57
    $region56: #{tpu_custom_call.1} parent=1 // pred_region
      %s465 = ssub.s32 16, 16
      %466 = vsyncadd [#allocation5], %s465
      %s468 = sshll.u32 [#allocation11], 4
      %s469 = int_to_ptr.vmem [resolvable:$true] %s468
      %471 = dma.vmem_to_hbm [thread:$0]  %s469, 16, %s9, [#allocation5]
    $region57: #{tpu_custom_call.1} parent=1 // pred_fallthru
      _
    // Predicated region
    $region58: #{tpu_custom_call.1} parent=1 // pred_check
      _
    $region59: #{tpu_custom_call.1} parent=1 // pred_check_branch
      %473 = sbr.rel (0) target = $region61
    $region60: #{tpu_custom_call.1} parent=1 // pred_region
      %474 = dma.done [#allocation5], 16
    $region61: #{tpu_custom_call.1} parent=1 // pred_fallthru
      _
    %475 = vsyncpa [#allocation4], 1
    %476 = vsyncpa [#allocation7], 1
    %477 = vsyncpa [#allocation10], 1
    %478 = vsyncpa [#allocation5], 1

</llo_original>
